<compile_context>
chip_gen: v6e
topology: v6e:2x2x1
jax: 0.10.0
libtpu: 0.0.40
codegen_flags: <defaults>
</compile_context>

<pallas_src>
import functools

import jax
import jax.numpy as jnp
from jax.experimental import pallas as pl
from jax.experimental.pallas import tpu as pltpu


# --------------------------------------------------------------------------------------
# helpers
# --------------------------------------------------------------------------------------
def _round_up(v, m):
    return (v + m - 1) // m * m


def _scoped_vmem_bytes():
    """Generation-aware scoped-VMEM budget (v5e/v6e: 64 MiB of 128; v7x: 32 MiB of 64)."""
    cap = 128 << 20
    try:
        cap = int(getattr(pltpu.get_tpu_info(), "vmem_capacity_bytes", cap))
    except Exception:
        cap = 64 << 20
    return max(16 << 20, min(cap // 2, 64 << 20))


def _largest_aligned_divisor(total, cap_cols):
    """Largest multiple-of-128 divisor of `total` (itself a multiple of 128) <= cap_cols."""
    cap_cols = max(128, (cap_cols // 128) * 128)
    best, t, limit = 128, 128, min(total, cap_cols)
    while t <= limit:
        if total % t == 0:
            best = t
        t += 128
    return best


# --------------------------------------------------------------------------------------
# kernels
# --------------------------------------------------------------------------------------
def _fused_kernel(x_ref, w1_ref, b1_ref, w2_ref, b2_ref, o_ref, *, inv_hw):
    """One sample fully resident in VMEM: pool + MLP + sigmoid + rescale.

    x_ref/o_ref: (1, C, S); w1_ref: (C8, C); b1_ref: (C8, 1); w2_ref: (C, C8); b2_ref: (C, 1)
    """
    xs = x_ref[0].astype(jnp.float32)                              # (C, S)
    mean = jnp.sum(xs, axis=-1, keepdims=True) * inv_hw            # (C, 1)
    h = jnp.dot(w1_ref[...], mean, preferred_element_type=jnp.float32) + b1_ref[...]
    h = jnp.maximum(h, 0.0)                                        # (C8, 1)
    g = jnp.dot(w2_ref[...], h, preferred_element_type=jnp.float32) + b2_ref[...]
    g = jax.nn.sigmoid(g)                                          # (C, 1)
    o_ref[0] = (xs * g).astype(o_ref.dtype)                        # lane broadcast only


def _pool_mlp_kernel(x_ref, w1_ref, b1_ref, w2_ref, b2_ref, gate_ref, acc_ref, *, inv_hw):
    """Spatial-sum accumulation per sample; on the last spatial tile run the 1x1-conv MLP.

    x_ref: (1, C, TS); gate_ref: (1, C, 1); acc_ref: (C, 1) f32 scratch.
    Spatial padding (if any) is zero, so the sum is exact; inv_hw uses the true H*W.
    """
    s = pl.program_id(1)

    @pl.when(s == 0)
    def _():
        acc_ref[...] = jnp.zeros_like(acc_ref)

    acc_ref[...] += jnp.sum(x_ref[0].astype(jnp.float32), axis=-1, keepdims=True)

    @pl.when(s == pl.num_programs(1) - 1)
    def _():
        mean = acc_ref[...] * inv_hw                               # (C, 1)
        h = jnp.dot(w1_ref[...], mean, preferred_element_type=jnp.float32) + b1_ref[...]
        h = jnp.maximum(h, 0.0)                                    # (C8, 1)
        g = jnp.dot(w2_ref[...], h, preferred_element_type=jnp.float32) + b2_ref[...]
        gate_ref[0] = jax.nn.sigmoid(g).astype(gate_ref.dtype)     # (C, 1)


def _scale_kernel(x_ref, gate_ref, o_ref):
    """out = x * gate, folded (N*C, S) layout: dense sublanes, lane-dense stores.

    x_ref/o_ref: (NC, TS); gate_ref: (NC, 1) broadcast along the lane axis.
    """
    o_ref[...] = (x_ref[...].astype(jnp.float32) * gate_ref[...]).astype(o_ref.dtype)


# --------------------------------------------------------------------------------------
# wrapper
# --------------------------------------------------------------------------------------
def ca_layer(x_nchw, w1, b1, w2, b2, *, force=None):
    """Forward of CALayer.

    x_nchw: (N, C, H, W)
    w1: (8C, C, 1, 1), b1: (8C,)  -- Conv2d(C, 8C, 1)
    w2: (C, 8C, 1, 1), b2: (C,)   -- Conv2d(8C, C, 1)
    force: None (auto) | "fused" | "split"  (testing hook)
    """
    N, C, H, W = x_nchw.shape
    C8 = w1.shape[0]
    S = H * W
    NC = N * C
    itemsize = jnp.dtype(x_nchw.dtype).itemsize

    # Weights in the "transposed" column orientation; biases as columns. All f32 math.
    w1k = w1.reshape(C8, C).astype(jnp.float32)     # (C8, C)
    w2k = w2.reshape(C, C8).astype(jnp.float32)     # (C, C8)
    b1k = b1.reshape(C8, 1).astype(jnp.float32)     # (C8, 1)
    b2k = b2.reshape(C, 1).astype(jnp.float32)      # (C, 1)

    scoped = _scoped_vmem_bytes()
    c_pad = _round_up(C, 8)
    s_pad = _round_up(S, 128)

    # Per-sample VMEM slab (sublane/lane padded), double-buffered, for input + output.
    slab = c_pad * s_pad * itemsize
    use_fused = (force == "fused") or (force is None and 4 * slab + (1 << 20) <= scoped)

    if use_fused:
        # ---- fused path: x read from HBM once, written once; gate never leaves VMEM ----
        x3 = x_nchw.reshape(N, C, S)
        out = pl.pallas_call(
            functools.partial(_fused_kernel, inv_hw=1.0 / float(S)),
            out_shape=jax.ShapeDtypeStruct((N, C, S), x_nchw.dtype),
            grid=(N,),
            in_specs=[
                pl.BlockSpec((1, C, S), lambda n: (n, 0, 0)),
                pl.BlockSpec((C8, C), lambda n: (0, 0)),
                pl.BlockSpec((C8, 1), lambda n: (0, 0)),
                pl.BlockSpec((C, C8), lambda n: (0, 0)),
                pl.BlockSpec((C, 1), lambda n: (0, 0)),
            ],
            out_specs=pl.BlockSpec((1, C, S), lambda n: (n, 0, 0)),
            compiler_params=pltpu.CompilerParams(
                dimension_semantics=("parallel",), vmem_limit_bytes=scoped),
        )(x3, w1k, b1k, w2k, b2k)
        return out.reshape(N, C, H, W)

    # ---- split path: (1) pool + MLP -> gate, (2) folded (N*C, S) rescale ----
    x2 = x_nchw.reshape(NC, S)
    if s_pad != S:
        # Zero-pad spatial to a 128 multiple: exact for the sum (divide by true S) and keeps
        # both passes on the pipelined, lane-aligned streaming path.
        x2 = jnp.pad(x2, ((0, 0), (0, s_pad - S)))
    x3 = x2.reshape(N, C, s_pad)

    nc_pad = _round_up(NC, 8)
    pool_budget = min(scoped // 4, 8 << 20)    # x double-buffered (2 live blocks)
    scale_budget = min(scoped // 6, 8 << 20)   # in + out, both double-buffered (4 live blocks)
    tile_pool = _largest_aligned_divisor(s_pad, pool_budget // (c_pad * itemsize))
    tile_scale = _largest_aligned_divisor(s_pad, scale_budget // (nc_pad * itemsize))

    # Kernel 1: global-avg-pool + 1x1-conv MLP + sigmoid -> per-(n, c) gate.
    gate = pl.pallas_call(
        functools.partial(_pool_mlp_kernel, inv_hw=1.0 / float(S)),
        out_shape=jax.ShapeDtypeStruct((N, C, 1), jnp.float32),
        grid=(N, s_pad // tile_pool),
        in_specs=[
            pl.BlockSpec((1, C, tile_pool), lambda n, s: (n, 0, s)),
            pl.BlockSpec((C8, C), lambda n, s: (0, 0)),
            pl.BlockSpec((C8, 1), lambda n, s: (0, 0)),
            pl.BlockSpec((C, C8), lambda n, s: (0, 0)),
            pl.BlockSpec((C, 1), lambda n, s: (0, 0)),
        ],
        out_specs=pl.BlockSpec((1, C, 1), lambda n, s: (n, 0, 0)),
        scratch_shapes=[pltpu.VMEM((C, 1), jnp.float32)],
        compiler_params=pltpu.CompilerParams(
            dimension_semantics=("parallel", "arbitrary"), vmem_limit_bytes=scoped),
    )(x3, w1k, b1k, w2k, b2k)

    gate2 = gate.reshape(NC, 1)

    # Kernel 2: channel-wise rescale in folded (N*C, S) layout, spatial axis parallel.
    # Note: assumes NC*128*itemsize fits the block budget (true for any realistic N*C).
    out2 = pl.pallas_call(
        _scale_kernel,
        out_shape=jax.ShapeDtypeStruct((NC, s_pad), x_nchw.dtype),
        grid=(s_pad // tile_scale,),
        in_specs=[
            pl.BlockSpec((NC, tile_scale), lambda s: (0, s)),
            pl.BlockSpec((NC, 1), lambda s: (0, 0)),
        ],
        out_specs=pl.BlockSpec((NC, tile_scale), lambda s: (0, s)),
        compiler_params=pltpu.CompilerParams(
            dimension_semantics=("parallel",), vmem_limit_bytes=scoped),
    )(x2, gate2)

    if s_pad != S:
        out2 = out2[:, :S]
    return out2.reshape(N, C, H, W)


# --------------------------------------------------------------------------------------
# reference + test
# --------------------------------------------------------------------------------------
def _reference(x, w1, b1, w2, b2):
    """Plain-JAX reference matching the PyTorch CALayer semantics."""
    C8 = w1.shape[0]
    C = w2.shape[0]
    y = jnp.mean(x, axis=(2, 3))                               # AdaptiveAvgPool2d(1)
    y = jnp.maximum(y @ w1.reshape(C8, C).T + b1, 0.0)         # 1x1 conv C->8C, ReLU
    y = jax.nn.sigmoid(y @ w2.reshape(C, C8).T + b2)           # 1x1 conv 8C->C, Sigmoid
    return x * y[:, :, None, None]


if __name__ == "__main__":
    key = jax.random.PRNGKey(0)
    k_x, k_w1, k_b1, k_w2, k_b2 = jax.random.split(key, 5)

    N, C, H, W = 2, 4, 16, 16
    C8 = C * 8

    x = jax.random.normal(k_x, (N, C, H, W), jnp.float32)
    w1 = jax.random.normal(k_w1, (C8, C, 1, 1), jnp.float32) * 0.1
    b1 = jax.random.normal(k_b1, (C8,), jnp.float32) * 0.1
    w2 = jax.random.normal(k_w2, (C, C8, 1, 1), jnp.float32) * 0.1
    b2 = jax.random.normal(k_b2, (C,), jnp.float32) * 0.1

    # Default (fused) path.
    out = jax.block_until_ready(ca_layer(x, w1, b1, w2, b2))
    ref = jax.block_until_ready(_reference(x, w1, b1, w2, b2))
    assert out.shape == (N, C, H, W)
    assert jnp.allclose(out, ref, rtol=1e-4, atol=1e-4), "fused path mismatch vs reference"

    # Also exercise the split (pool+MLP, then folded rescale) path, including the
    # non-128-aligned spatial padding branch.
    for hh, ww in ((32, 32), (10, 10)):
        xb = jax.random.normal(k_x, (N, C, hh, ww), jnp.float32)
        ob = jax.block_until_ready(ca_layer(xb, w1, b1, w2, b2, force="split"))
        rb = _reference(xb, w1, b1, w2, b2)
        assert jnp.allclose(ob, rb, rtol=1e-4, atol=1e-4), f"split path mismatch at {hh}x{ww}"

    print("KERNEL_OK")
</pallas_src>

<mosaic_0001>
module attributes {stable_mosaic.version = 11 : i64} {
  func.func @_fused_kernel(%arg0: i32, %arg1: memref<1x4x256xf32, #tpu.memory_space<vmem>>, %arg2: memref<32x4xf32, #tpu.memory_space<vmem>>, %arg3: memref<32x1xf32, #tpu.memory_space<vmem>>, %arg4: memref<4x32xf32, #tpu.memory_space<vmem>>, %arg5: memref<4x1xf32, #tpu.memory_space<vmem>>, %arg6: memref<1x4x256xf32, #tpu.memory_space<vmem>>) attributes {dimension_semantics = [#tpu.dimension_semantics<parallel>], iteration_bounds = array<i64: 2>, scalar_prefetch = 0 : i64, scratch_operands = 0 : i64, tpu.core_type = #tpu.core_type<tc>, window_params = [{transform_indices = @transform_0, window_bounds = array<i64: 1, 4, 256>}, {pipeline_mode = #tpu.pipeline_mode<synchronous>, transform_indices = @transform_1, window_bounds = array<i64: 32, 4>}, {pipeline_mode = #tpu.pipeline_mode<synchronous>, transform_indices = @transform_2, window_bounds = array<i64: 32, 1>}, {pipeline_mode = #tpu.pipeline_mode<synchronous>, transform_indices = @transform_3, window_bounds = array<i64: 4, 32>}, {pipeline_mode = #tpu.pipeline_mode<synchronous>, transform_indices = @transform_4, window_bounds = array<i64: 4, 1>}, {transform_indices = @transform_5, window_bounds = array<i64: 1, 4, 256>}]} {
    %c0 = arith.constant 0 : index
    %c0_0 = arith.constant 0 : index
    %c0_1 = arith.constant 0 : index
    %0 = vector.load %arg1[%c0, %c0_0, %c0_1] : memref<1x4x256xf32, #tpu.memory_space<vmem>>, vector<1x4x256xf32>
    %1 = vector.shape_cast %0 : vector<1x4x256xf32> to vector<4x256xf32>
    %cst = arith.constant dense<0.000000e+00> : vector<4xf32>
    %2 = vector.multi_reduction <add>, %1, %cst [1] : vector<4x256xf32> to vector<4xf32>
    %3 = vector.shape_cast %2 : vector<4xf32> to vector<4x1xf32>
    %cst_2 = arith.constant 3.906250e-03 : f32
    %4 = vector.broadcast %cst_2 : f32 to vector<4x1xf32>
    %5 = arith.mulf %3, %4 : vector<4x1xf32>
    %c0_3 = arith.constant 0 : index
    %c0_4 = arith.constant 0 : index
    %6 = vector.load %arg2[%c0_3, %c0_4] : memref<32x4xf32, #tpu.memory_space<vmem>>, vector<32x4xf32>
    %cst_5 = arith.constant dense<0.000000e+00> : vector<32x1xf32>
    %7 = tpu.matmul %6, %5, %cst_5 {dimension_numbers = #tpu.dot_dimension_numbers<[1], [0], [0], [1], [0, 0, 1, 1], [], []>} : vector<32x4xf32>, vector<4x1xf32>, vector<32x1xf32> -> vector<32x1xf32>
    %c0_6 = arith.constant 0 : index
    %c0_7 = arith.constant 0 : index
    %8 = vector.load %arg3[%c0_6, %c0_7] : memref<32x1xf32, #tpu.memory_space<vmem>>, vector<32x1xf32>
    %9 = arith.addf %7, %8 : vector<32x1xf32>
    %cst_8 = arith.constant 0.000000e+00 : f32
    %10 = vector.broadcast %cst_8 : f32 to vector<32x1xf32>
    %11 = arith.maximumf %9, %10 : vector<32x1xf32>
    %c0_9 = arith.constant 0 : index
    %c0_10 = arith.constant 0 : index
    %12 = vector.load %arg4[%c0_9, %c0_10] : memref<4x32xf32, #tpu.memory_space<vmem>>, vector<4x32xf32>
    %cst_11 = arith.constant dense<0.000000e+00> : vector<4x1xf32>
    %13 = tpu.matmul %12, %11, %cst_11 {dimension_numbers = #tpu.dot_dimension_numbers<[1], [0], [0], [1], [0, 0, 1, 1], [], []>} : vector<4x32xf32>, vector<32x1xf32>, vector<4x1xf32> -> vector<4x1xf32>
    %c0_12 = arith.constant 0 : index
    %c0_13 = arith.constant 0 : index
    %14 = vector.load %arg5[%c0_12, %c0_13] : memref<4x1xf32, #tpu.memory_space<vmem>>, vector<4x1xf32>
    %15 = arith.addf %13, %14 : vector<4x1xf32>
    %16 = arith.negf %15 : vector<4x1xf32>
    %17 = math.exp %16 : vector<4x1xf32>
    %cst_14 = arith.constant 1.000000e+00 : f32
    %18 = vector.broadcast %cst_14 : f32 to vector<4x1xf32>
    %19 = arith.addf %18, %17 : vector<4x1xf32>
    %20 = arith.divf %18, %19 : vector<4x1xf32>
    %21 = vector.broadcast %20 : vector<4x1xf32> to vector<4x256xf32>
    %22 = arith.mulf %1, %21 : vector<4x256xf32>
    %c0_15 = arith.constant 0 : index
    %c0_16 = arith.constant 0 : index
    %c0_17 = arith.constant 0 : index
    %23 = vector.load %arg6[%c0_15, %c0_16, %c0_17] : memref<1x4x256xf32, #tpu.memory_space<vmem>>, vector<1x4x256xf32>
    %24 = vector.shape_cast %23 : vector<1x4x256xf32> to vector<4x256xf32>
    %25 = vector.shape_cast %22 : vector<4x256xf32> to vector<1x4x256xf32>
    tpu.vector_store %arg6[%c0_15, %c0_16, %c0_17], %25 {strides = array<i32>} : memref<1x4x256xf32, #tpu.memory_space<vmem>>, vector<1x4x256xf32>,
    return
  }
  func.func @transform_0(%arg0: i32) -> (i32, i32, i32) {
    %c0_i32 = arith.constant 0 : i32
    %c0_i32_0 = arith.constant 0 : i32
    %c0_i32_1 = arith.constant 0 : i32
    return %arg0, %c0_i32, %c0_i32_0 : i32, i32, i32
  }
  func.func @transform_1(%arg0: i32) -> (i32, i32) {
    %c0_i32 = arith.constant 0 : i32
    %c0_i32_0 = arith.constant 0 : i32
    %c0_i32_1 = arith.constant 0 : i32
    return %c0_i32, %c0_i32_0 : i32, i32
  }
  func.func @transform_2(%arg0: i32) -> (i32, i32) {
    %c0_i32 = arith.constant 0 : i32
    %c0_i32_0 = arith.constant 0 : i32
    %c0_i32_1 = arith.constant 0 : i32
    return %c0_i32, %c0_i32_0 : i32, i32
  }
  func.func @transform_3(%arg0: i32) -> (i32, i32) {
    %c0_i32 = arith.constant 0 : i32
    %c0_i32_0 = arith.constant 0 : i32
    %c0_i32_1 = arith.constant 0 : i32
    return %c0_i32, %c0_i32_0 : i32, i32
  }
  func.func @transform_4(%arg0: i32) -> (i32, i32) {
    %c0_i32 = arith.constant 0 : i32
    %c0_i32_0 = arith.constant 0 : i32
    %c0_i32_1 = arith.constant 0 : i32
    return %c0_i32, %c0_i32_0 : i32, i32
  }
  func.func @transform_5(%arg0: i32) -> (i32, i32, i32) {
    %c0_i32 = arith.constant 0 : i32
    %c0_i32_0 = arith.constant 0 : i32
    %c0_i32_1 = arith.constant 0 : i32
    return %arg0, %c0_i32, %c0_i32_0 : i32, i32, i32
  }
}

</mosaic_0001>

<llo_original>
// kernel: tpu_custom_call.1
$region0: #{tpu_custom_call.1}
  #allocation0 [shape = 'u32[]', space=smem, size = 0x4, offset = 0x4, fixed_abs, tag = 'smem constant byte address 0x4 - core index']
  #allocation1 [shape = 'u32[144,128]{1,0:T(1,128)}', space=vmem, size = 0x12000, scoped, tag = 'internal scratch']
  %s0 = inlined_call_operand.vmem [shape: f32[2,4,256], index: 0, kind: input, shape index: {}]
  %s1 = inlined_call_operand.vmem [shape: f32[32,4], index: 1, kind: input, shape index: {}]
  %s2 = inlined_call_operand.vmem [shape: f32[32,1], index: 2, kind: input, shape index: {}]
  %s3 = inlined_call_operand.vmem [shape: f32[4,32], index: 3, kind: input, shape index: {}]
  %s4 = inlined_call_operand.vmem [shape: f32[4,1], index: 4, kind: input, shape index: {}]
  %s5 = inlined_call_operand.hbm [shape: f32[2,4,256], index: 5, kind: output, shape index: {}]
  %s6 = sld [smem:[#allocation0]]
  $region53: #{tpu_custom_call.1} parent=0
    _
  %s8 = ssub.s32 1, %s6
  %s9 = scalar_select 0, %s8, %s6
  $region1: #{tpu_custom_call.1} parent=0
    #allocation2 [shape = 'u8[8192]{0}', space=vmem, size = 0x2000, scoped, tag = 'output window, operand 0']
    #allocation3 [shape = 's32[2]{0}', space=sflag, size = 0x8, scoped, tag = 'scoped memory for tpu_custom_call.1']
    %10 = vsyncpa [#allocation3], 0
    %s11 = scalar_lea.sflag [#allocation3], 1
    %12 = vsyncpa %s11, 0
    loop: start=0, step=1, limit=4
    $region2: #{tpu_custom_call.1} parent=1 // loop_pre_header
      _
    $region3: #{tpu_custom_call.1} parent=1 // loop_header
      %s14 = sphi 0, %s18
      %p15 = scmp.ge.s32.totalorder %s14, 4
      %s24 = sphi 0, %s26
      %s27 = sphi 0, %s24
      %s28 = sphi 0, %s27
      %s44 = sphi 0, %s28
      %s48 = sphi 0, %s48
      %s50 = sphi 0, %s48
      %s51 = sphi 0, %s50
      %s65 = sphi 0, %s51
      %s69 = sphi 0, %s69
      %s71 = sphi 0, %s69
      %s72 = sphi 0, %s71
      %s86 = sphi 0, %s72
      %s90 = sphi 0, %s90
      %s92 = sphi 0, %s90
      %s93 = sphi 0, %s92
      %s107 = sphi 0, %s93
      %s111 = sphi 0, %s111
      %s113 = sphi 0, %s111
      %s114 = sphi 0, %s113
      %s128 = sphi 0, %s114
      %s134 = sphi 0, %s136
      %s137 = sphi 0, %s134
      %s138 = sphi 0, %s137
      %s154 = sphi 0, %s138
    $region4: #{tpu_custom_call.1} parent=1 // loop_header_branch
      %17 = sbr.rel (%p15) target = $region8
    $region5: #{tpu_custom_call.1} parent=1 // loop_body
      %s19 = ssub.s32 %s14, 1
      %s20 = ssub.s32 %s14, 2
      %s21 = sadd.s32 %s14, 1
      %s22 = ssub.s32 %s14, %s21
      %p23 = scmp.eq.s32.totalorder %s22, 0
      %s25 = sadd.s32 %s24, 1
      %s26 = scalar_select %p23, %s24, %s25
      %p29 = pneg %p23
      %p30 = scmp.eq.s32.totalorder %s14, 1
      %p31 = por %p29, %p30
      %p32 = scmp.ne.s32.totalorder %s24, %s27
      %p33 = scmp.eq.s32.totalorder %s14, 0
      %p34 = por %p32, %p33
      %p35 = scmp.ne.s32.totalorder %s24, %s27
      %p36 = scmp.eq.s32.totalorder %s19, 1
      %p37 = por %p35, %p36
      %p38 = scmp.ne.s32.totalorder %s27, %s28
      %p39 = scmp.eq.s32.totalorder %s19, 0
      %p40 = por %p38, %p39
      %p41 = scmp.ne.s32.totalorder %s27, %s28
      %p42 = scmp.eq.s32.totalorder %s20, 1
      %p43 = por %p41, %p42
      %p45 = scmp.ne.s32.totalorder %s28, %s44
      %p46 = scmp.eq.s32.totalorder %s20, 0
      %p47 = por %p45, %p46
      %s49 = sadd.s32 %s48, 1
      %p52 = scmp.eq.s32.totalorder %s14, 1
      %p53 = scmp.ne.s32.totalorder %s48, %s50
      %p54 = scmp.eq.s32.totalorder %s14, 0
      %p55 = por %p53, %p54
      %p56 = scmp.ne.s32.totalorder %s48, %s50
      %p57 = scmp.eq.s32.totalorder %s19, 1
      %p58 = por %p56, %p57
      %p59 = scmp.ne.s32.totalorder %s50, %s51
      %p60 = scmp.eq.s32.totalorder %s19, 0
      %p61 = por %p59, %p60
      %p62 = scmp.ne.s32.totalorder %s50, %s51
      %p63 = scmp.eq.s32.totalorder %s20, 1
      %p64 = por %p62, %p63
      %p66 = scmp.ne.s32.totalorder %s51, %s65
      %p67 = scmp.eq.s32.totalorder %s20, 0
      %p68 = por %p66, %p67
      %s70 = sadd.s32 %s69, 1
      %p73 = scmp.eq.s32.totalorder %s14, 1
      %p74 = scmp.ne.s32.totalorder %s69, %s71
      %p75 = scmp.eq.s32.totalorder %s14, 0
      %p76 = por %p74, %p75
      %p77 = scmp.ne.s32.totalorder %s69, %s71
      %p78 = scmp.eq.s32.totalorder %s19, 1
      %p79 = por %p77, %p78
      %p80 = scmp.ne.s32.totalorder %s71, %s72
      %p81 = scmp.eq.s32.totalorder %s19, 0
      %p82 = por %p80, %p81
      %p83 = scmp.ne.s32.totalorder %s71, %s72
      %p84 = scmp.eq.s32.totalorder %s20, 1
      %p85 = por %p83, %p84
      %p87 = scmp.ne.s32.totalorder %s72, %s86
      %p88 = scmp.eq.s32.totalorder %s20, 0
      %p89 = por %p87, %p88
      %s91 = sadd.s32 %s90, 1
      %p94 = scmp.eq.s32.totalorder %s14, 1
      %p95 = scmp.ne.s32.totalorder %s90, %s92
      %p96 = scmp.eq.s32.totalorder %s14, 0
      %p97 = por %p95, %p96
      %p98 = scmp.ne.s32.totalorder %s90, %s92
      %p99 = scmp.eq.s32.totalorder %s19, 1
      %p100 = por %p98, %p99
      %p101 = scmp.ne.s32.totalorder %s92, %s93
      %p102 = scmp.eq.s32.totalorder %s19, 0
      %p103 = por %p101, %p102
      %p104 = scmp.ne.s32.totalorder %s92, %s93
      %p105 = scmp.eq.s32.totalorder %s20, 1
      %p106 = por %p104, %p105
      %p108 = scmp.ne.s32.totalorder %s93, %s107
      %p109 = scmp.eq.s32.totalorder %s20, 0
      %p110 = por %p108, %p109
      %s112 = sadd.s32 %s111, 1
      %p115 = scmp.eq.s32.totalorder %s14, 1
      %p116 = scmp.ne.s32.totalorder %s111, %s113
      %p117 = scmp.eq.s32.totalorder %s14, 0
      %p118 = por %p116, %p117
      %p119 = scmp.ne.s32.totalorder %s111, %s113
      %p120 = scmp.eq.s32.totalorder %s19, 1
      %p121 = por %p119, %p120
      %p122 = scmp.ne.s32.totalorder %s113, %s114
      %p123 = scmp.eq.s32.totalorder %s19, 0
      %p124 = por %p122, %p123
      %p125 = scmp.ne.s32.totalorder %s113, %s114
      %p126 = scmp.eq.s32.totalorder %s20, 1
      %p127 = por %p125, %p126
      %p129 = scmp.ne.s32.totalorder %s114, %s128
      %p130 = scmp.eq.s32.totalorder %s20, 0
      %p131 = por %p129, %p130
      %s132 = ssub.s32 %s14, %s21
      %p133 = scmp.eq.s32.totalorder %s132, 0
      %s135 = sadd.s32 %s134, 1
      %s136 = scalar_select %p133, %s134, %s135
      %p139 = pneg %p133
      %p140 = scmp.eq.s32.totalorder %s14, 1
      %p141 = por %p139, %p140
      %p142 = scmp.ne.s32.totalorder %s134, %s137
      %p143 = scmp.eq.s32.totalorder %s14, 0
      %p144 = por %p142, %p143
      %p145 = scmp.ne.s32.totalorder %s134, %s137
      %p146 = scmp.eq.s32.totalorder %s19, 1
      %p147 = por %p145, %p146
      %p148 = scmp.ne.s32.totalorder %s137, %s138
      %p149 = scmp.eq.s32.totalorder %s19, 0
      %p150 = por %p148, %p149
      %p151 = scmp.ne.s32.totalorder %s137, %s138
      %p152 = scmp.eq.s32.totalorder %s20, 1
      %p153 = por %p151, %p152
      %p155 = scmp.ne.s32.totalorder %s138, %s154
      %p156 = scmp.eq.s32.totalorder %s20, 0
      %p157 = por %p155, %p156
      %p158 = scmp.le.s32.totalorder 1, %s14
      %p159 = scmp.lt.s32.totalorder %s14, 3
      %p160 = pnand %p158, %p159
      %p161 = pneg %p160
      // Predicated region
      $region9: #{tpu_custom_call.1} parent=5 // pred_check
        _
      $region10: #{tpu_custom_call.1} parent=5 // pred_check_branch
        %163 = sbr.rel (%p160) target = $region12
      $region11: #{tpu_custom_call.1} parent=5 // pred_region
        %s164 = ssub.s32 %s14, 1
        // Predicated region
        $region13: #{tpu_custom_call.1} parent=11 // pred_check
          %p165 = pneg %p61
        $region14: #{tpu_custom_call.1} parent=11 // pred_check_branch
          %167 = sbr.rel (%p165) target = $region16
        $region15: #{tpu_custom_call.1} parent=11 // pred_region
          _
        $region16: #{tpu_custom_call.1} parent=11 // pred_fallthru
          _
        // Predicated region
        $region17: #{tpu_custom_call.1} parent=11 // pred_check
          %p168 = pneg %p82
        $region18: #{tpu_custom_call.1} parent=11 // pred_check_branch
          %170 = sbr.rel (%p168) target = $region20
        $region19: #{tpu_custom_call.1} parent=11 // pred_region
          _
        $region20: #{tpu_custom_call.1} parent=11 // pred_fallthru
          _
        // Predicated region
        $region21: #{tpu_custom_call.1} parent=11 // pred_check
          %p171 = pneg %p103
        $region22: #{tpu_custom_call.1} parent=11 // pred_check_branch
          %173 = sbr.rel (%p171) target = $region24
        $region23: #{tpu_custom_call.1} parent=11 // pred_region
          _
        $region24: #{tpu_custom_call.1} parent=11 // pred_fallthru
          _
        // Predicated region
        $region25: #{tpu_custom_call.1} parent=11 // pred_check
          %p174 = pneg %p124
        $region26: #{tpu_custom_call.1} parent=11 // pred_check_branch
          %176 = sbr.rel (%p174) target = $region28
        $region27: #{tpu_custom_call.1} parent=11 // pred_region
          _
        $region28: #{tpu_custom_call.1} parent=11 // pred_fallthru
          _
      $region12: #{tpu_custom_call.1} parent=5 // pred_fallthru
        _
      %p177 = scmp.lt.s32.totalorder %s14, 2
      // Predicated region
      $region29: #{tpu_custom_call.1} parent=5 // pred_check
        %p178 = pneg %p177
      $region30: #{tpu_custom_call.1} parent=5 // pred_check_branch
        %180 = sbr.rel (%p178) target = $region32
      $region31: #{tpu_custom_call.1} parent=5 // pred_region
        // Predicated region
        $region33: #{tpu_custom_call.1} parent=31 // pred_check
          %p181 = pneg %p34
        $region34: #{tpu_custom_call.1} parent=31 // pred_check_branch
          %183 = sbr.rel (%p181) target = $region36
        $region35: #{tpu_custom_call.1} parent=31 // pred_region
          %p184 = scmp.lt.s32.totalorder %s14, 1
          %s185 = scalar_select %p184, %s14, 1
          %s186 = smul.addr %s185, 2
          %s187 = smul.addr %s186, 4
          %s188 = scalar_lea.vmem %s0, %s187
        $region36: #{tpu_custom_call.1} parent=31 // pred_fallthru
          _
      $region32: #{tpu_custom_call.1} parent=5 // pred_fallthru
        _
      %p189 = scmp.le.s32.totalorder 1, %s14
      %p190 = scmp.lt.s32.totalorder %s14, 3
      %p191 = pnand %p189, %p190
      %p192 = pneg %p191
      // Predicated region
      $region37: #{tpu_custom_call.1} parent=5 // pred_check
        _
      $region38: #{tpu_custom_call.1} parent=5 // pred_check_branch
        %194 = sbr.rel (%p191) target = $region40
      $region39: #{tpu_custom_call.1} parent=5 // pred_region
        %s195 = ssub.s32 %s14, 1
        %p196 = scmp.lt.s32.totalorder %s19, 1
        %s197 = scalar_select %p196, %s19, 1
        %s198 = smul.addr %s197, 2
        %s199 = smul.addr %s198, 4
        %s200 = scalar_lea.vmem %s0, %s199
        %p201 = pneg %p40
        %p202 = pneg %p37
        %p203 = pneg %p61
        %p204 = pneg %p58
        %p205 = pneg %p82
        %p206 = pneg %p79
        %p207 = pneg %p103
        %p208 = pneg %p100
        %p209 = pneg %p124
        %p210 = pneg %p121
        %p211 = pneg %p150
        %p212 = pneg %p147
        %s213 = sand.u32 %s137, 1
        %s214 = scalar_lea.sflag [#allocation3], %s213
        %s215 = sand.u32 %s137, 1
        %s216 = smul.addr %s215, 8
        %s217 = scalar_lea.vmem [#allocation2], %s216
        %p218 = scmp.lt.s32.totalorder %s19, 1
        %s219 = scalar_select %p218, %s19, 1
        %s220 = smul.addr %s219, 2
        %s221 = smul.addr %s220, 4
        %s222 = scalar_lea.vmem %s0, %s221
        %v223 = vld [vmem:[%s222] sm:$0xff]
        %v225 = vcombine.high %v223, %v223
        %vm227 = vcmask 1043456
        %v228 = vsel %vm227, %v223, 0.0
        %v229 = vsel %vm227, %v225, 0.0
        %v230 = vadd.f32 %v228, %v229
        %231 = vadd.xlane.f32.xlu0 %v230
        %v232 = vpop.xlane.xlu0 %231
        %v233 = vmul.f32 %v232, 0.00390625
        %v234 = vld [vmem:[%s1] sm:$0xff]
        %v235 = vld [vmem:[%s1 + $0x8] sm:$0xff]
        %v236 = vld [vmem:[%s1 + $0x10] sm:$0xff]
        %v237 = vld [vmem:[%s1 + $0x18] sm:$0xff]
        %v238 = vld [vmem:[%s2] sm:$0xff]
        %v239 = vld [vmem:[%s2 + $0x8] sm:$0xff]
        %v240 = vld [vmem:[%s2 + $0x10] sm:$0xff]
        %v241 = vld [vmem:[%s2 + $0x18] sm:$0xff]
        %vm242 = vcmask 31744
        %v244 = vsel %vm242, %v234, 0
        %v247 = vsel %vm242, %v235, 0
        %v250 = vsel %vm242, %v236, 0
        %v253 = vsel %vm242, %v237, 0
        %v256 = vsel %vm227, %v233, 0
        %258 = vmatprep.subr.mxu0 0.0
        %259 = vmatpush1.msra.mxu0 0.0
        %260 = vmatprep.subr.mxu0 0.0
        %261 = vmatpush1.msra.mxu0 0.0
        %262 = vmatprep.subr.mxu0 0.0
        %263 = vmatpush1.msra.mxu0 0.0
        %264 = vmatprep.subr.mxu0 0.0
        %265 = vmatpush1.msra.mxu0 0.0
        %266 = vmatprep.subr.mxu0 0.0
        %267 = vmatpush1.msra.mxu0 0.0
        %268 = vmatprep.subr.mxu0 0.0
        %269 = vmatpush1.msra.mxu0 0.0
        %270 = vmatprep.subr.mxu0 0.0
        %271 = vmatpush1.msra.mxu0 0.0
        %272 = vmatprep.subr.mxu0 0.0
        %273 = vmatpush1.msra.mxu0 0.0
        %274 = vmatprep.subr.mxu0 0.0
        %275 = vmatpush1.msra.mxu0 0.0
        %276 = vmatprep.subr.mxu0 0.0
        %277 = vmatpush1.msra.mxu0 0.0
        %278 = vmatprep.subr.mxu0 0.0
        %279 = vmatpush1.msra.mxu0 0.0
        %280 = vmatprep.subr.mxu0 0.0
        %281 = vmatpush1.msra.mxu0 0.0
        %282 = vmatprep.subr.mxu0 0.0
        %283 = vmatpush1.msra.mxu0 0.0
        %284 = vmatprep.subr.mxu0 0.0
        %285 = vmatpush1.msra.mxu0 0.0
        %286 = vmatprep.subr.mxu0 0.0
        %287 = vmatpush1.msra.mxu0 0.0
        %288 = vmatprep.subr.mxu0 0.0
        %289 = vmatpush1.msra.mxu0 %v256
        %290 = vmatprep.subr.mxu0 0.0
        %291 = vmatpush2.msra.mxu0 0.0
        %292 = vmatprep.subr.mxu0 0.0
        %293 = vmatpush2.msra.mxu0 0.0
        %294 = vmatprep.subr.mxu0 0.0
        %295 = vmatpush2.msra.mxu0 0.0
        %296 = vmatprep.subr.mxu0 0.0
        %297 = vmatpush2.msra.mxu0 0.0
        %298 = vmatprep.subr.mxu0 0.0
        %299 = vmatpush2.msra.mxu0 0.0
        %300 = vmatprep.subr.mxu0 0.0
        %301 = vmatpush2.msra.mxu0 0.0
        %302 = vmatprep.subr.mxu0 0.0
        %303 = vmatpush2.msra.mxu0 0.0
        %304 = vmatprep.subr.mxu0 0.0
        %305 = vmatpush2.msra.mxu0 0.0
        %306 = vmatprep.subr.mxu0 0.0
        %307 = vmatpush2.msra.mxu0 0.0
        %308 = vmatprep.subr.mxu0 0.0
        %309 = vmatpush2.msra.mxu0 0.0
        %310 = vmatprep.subr.mxu0 0.0
        %311 = vmatpush2.msra.mxu0 0.0
        %312 = vmatprep.subr.mxu0 0.0
        %313 = vmatpush2.msra.mxu0 0.0
        %314 = vmatprep.subr.mxu0 0.0
        %315 = vmatpush2.msra.mxu0 0.0
        %316 = vmatprep.subr.mxu0 0.0
        %317 = vmatpush2.msra.mxu0 0.0
        %318 = vmatprep.subr.mxu0 0.0
        %319 = vmatpush2.msra.mxu0 0.0
        %320 = vmatprep.subr.mxu0 0.0
        %321 = vmatpush2.msra.mxu0 0.0
        %322 = vmatprep.mubr.f32.mxu0 0.0
        %323 = vmatmul.mubr.f32.gmra.mxu0 %v244
        %v324 = vpop.f32.mrf.mxu0
        %v325 = vadd.f32 %v238, %v324
        %v326 = vpop.f32.mrf.mxu0
        %327 = vmatprep.mubr.f32.mxu0 0.0
        %328 = vmatmul.mubr.f32.gmra.mxu0 %v247
        %v329 = vpop.f32.mrf.mxu0
        %v330 = vadd.f32 %v239, %v329
        %v331 = vpop.f32.mrf.mxu0
        %332 = vmatprep.mubr.f32.mxu0 0.0
        %333 = vmatmul.mubr.f32.gmra.mxu0 %v250
        %v334 = vpop.f32.mrf.mxu0
        %v335 = vadd.f32 %v240, %v334
        %v336 = vpop.f32.mrf.mxu0
        %337 = vmatprep.mubr.f32.mxu0 0.0
        %338 = vmatmul.mubr.f32.gmra.mxu0 %v253
        %v339 = vpop.f32.mrf.mxu0
        %v340 = vadd.f32 %v241, %v339
        %v341 = vpop.f32.mrf.mxu0
        %342 = vdwg.mxu0
        %v343 = vmax.f32 %v325, 0.0
        %v344 = vmax.f32 %v330, 0.0
        %v345 = vmax.f32 %v335, 0.0
        %v346 = vmax.f32 %v340, 0.0
        %v347 = vld [vmem:[%s3] sm:$0xf]
        %v348 = vld [vmem:[%s4] sm:$0xf]
        %vm349 = vcmask 261120
        %v351 = vsel %vm349, %v347, 0
        %353 = vmatprep.subr.mxu0 0.0
        %354 = vmatpush1.msra.mxu0 0.0
        %355 = vmatprep.subr.mxu0 0.0
        %356 = vmatpush1.msra.mxu0 0.0
        %357 = vmatprep.subr.mxu0 0.0
        %358 = vmatpush1.msra.mxu0 0.0
        %359 = vmatprep.subr.mxu0 0.0
        %360 = vmatpush1.msra.mxu0 0.0
        %361 = vmatprep.subr.mxu0 0.0
        %362 = vmatpush1.msra.mxu0 0.0
        %363 = vmatprep.subr.mxu0 0.0
        %364 = vmatpush1.msra.mxu0 0.0
        %365 = vmatprep.subr.mxu0 0.0
        %366 = vmatpush1.msra.mxu0 0.0
        %367 = vmatprep.subr.mxu0 0.0
        %368 = vmatpush1.msra.mxu0 0.0
        %369 = vmatprep.subr.mxu0 0.0
        %370 = vmatpush1.msra.mxu0 0.0
        %371 = vmatprep.subr.mxu0 0.0
        %372 = vmatpush1.msra.mxu0 0.0
        %373 = vmatprep.subr.mxu0 0.0
        %374 = vmatpush1.msra.mxu0 0.0
        %375 = vmatprep.subr.mxu0 0.0
        %376 = vmatpush1.msra.mxu0 0.0
        %377 = vmatprep.subr.mxu0 0.0
        %378 = vmatpush1.msra.mxu0 %v346
        %379 = vmatprep.subr.mxu0 0.0
        %380 = vmatpush1.msra.mxu0 %v345
        %381 = vmatprep.subr.mxu0 0.0
        %382 = vmatpush1.msra.mxu0 %v344
        %383 = vmatprep.subr.mxu0 0.0
        %384 = vmatpush1.msra.mxu0 %v343
        %385 = vmatprep.subr.mxu0 0.0
        %386 = vmatpush2.msra.mxu0 0.0
        %387 = vmatprep.subr.mxu0 0.0
        %388 = vmatpush2.msra.mxu0 0.0
        %389 = vmatprep.subr.mxu0 0.0
        %390 = vmatpush2.msra.mxu0 0.0
        %391 = vmatprep.subr.mxu0 0.0
        %392 = vmatpush2.msra.mxu0 0.0
        %393 = vmatprep.subr.mxu0 0.0
        %394 = vmatpush2.msra.mxu0 0.0
        %395 = vmatprep.subr.mxu0 0.0
        %396 = vmatpush2.msra.mxu0 0.0
        %397 = vmatprep.subr.mxu0 0.0
        %398 = vmatpush2.msra.mxu0 0.0
        %399 = vmatprep.subr.mxu0 0.0
        %400 = vmatpush2.msra.mxu0 0.0
        %401 = vmatprep.subr.mxu0 0.0
        %402 = vmatpush2.msra.mxu0 0.0
        %403 = vmatprep.subr.mxu0 0.0
        %404 = vmatpush2.msra.mxu0 0.0
        %405 = vmatprep.subr.mxu0 0.0
        %406 = vmatpush2.msra.mxu0 0.0
        %407 = vmatprep.subr.mxu0 0.0
        %408 = vmatpush2.msra.mxu0 0.0
        %409 = vmatprep.subr.mxu0 0.0
        %410 = vmatpush2.msra.mxu0 0.0
        %411 = vmatprep.subr.mxu0 0.0
        %412 = vmatpush2.msra.mxu0 0.0
        %413 = vmatprep.subr.mxu0 0.0
        %414 = vmatpush2.msra.mxu0 0.0
        %415 = vmatprep.subr.mxu0 0.0
        %416 = vmatpush2.msra.mxu0 0.0
        %417 = vmatprep.mubr.f32.mxu0 0.0
        %418 = vmatmul.mubr.f32.gmra.mxu0 %v351
        %v419 = vpop.f32.mrf.mxu0
        %v420 = vadd.f32 %v348, %v419
        %v421 = vpop.f32.mrf.mxu0
        %422 = vdwg.mxu0
        %v423 = vxor.u32 %v420, 2147483648
        %v424 = vmul.f32 %v423, 1.442695
        %v425 = vpow.pop %v424
        %v426 = vadd.f32 %v425, 1.0
        %v427 = vrcp.pop %v426
        %v428 = vmul.f32 1.0, %v427
        %430 = vset.pattern.permute.xlu0 0
        %431 = vperm.xlu0 %430, %v428
        %v432 = vpop.permute.xlu0 %431
        %v434 = vunpack.c.l.s4 839922192
        %v435 = vunpack.c.0.s8 %v434
        %v436 = vlaneseq
        %v437 = vshrl.u32 %v436, 7
        %v438 = vsub.s32 %v435, %v437
        %v439 = vrot.slane %v432, %v438
        %v441 = vmul.f32 %v223, %v439
        %442 = vst [vmem:[%s217] sm:$0xff] %v441
        %s443 = sand.u32 %s137, 1
        %s444 = scalar_lea.sflag [#allocation3], %s443
        %s445 = sand.u32 %s137, 1
        %s446 = smul.addr %s445, 8
        %s447 = scalar_lea.vmem [#allocation2], %s446
        // Predicated region
        $region41: #{tpu_custom_call.1} parent=39 // pred_check
          %p448 = pneg %p147
        $region42: #{tpu_custom_call.1} parent=39 // pred_check_branch
          %450 = sbr.rel (%p448) target = $region44
        $region43: #{tpu_custom_call.1} parent=39 // pred_region
          %s452 = ssub.s32 128, 128
          %453 = vsyncadd %s444, %s452
          %s454 = smul.addr %s19, 2
          %s455 = smul.addr %s454, 64
          %s456 = scalar_lea.hbm %s5, %s455
          %s458 = sshll.u32 %s447, 4
          %s459 = int_to_ptr.vmem [resolvable:$true] %s458
          %461 = dma.vmem_to_hbm [thread:$0]  %s459, 128, %s456, %s444
        $region44: #{tpu_custom_call.1} parent=39 // pred_fallthru
          _
      $region40: #{tpu_custom_call.1} parent=5 // pred_fallthru
        _
      %p462 = scmp.le.s32.totalorder 2, %s14
      // Predicated region
      $region45: #{tpu_custom_call.1} parent=5 // pred_check
        %p463 = pneg %p462
      $region46: #{tpu_custom_call.1} parent=5 // pred_check_branch
        %465 = sbr.rel (%p463) target = $region48
      $region47: #{tpu_custom_call.1} parent=5 // pred_region
        %s466 = ssub.s32 %s14, 2
        // Predicated region
        $region49: #{tpu_custom_call.1} parent=47 // pred_check
          %p467 = pneg %p153
        $region50: #{tpu_custom_call.1} parent=47 // pred_check_branch
          %469 = sbr.rel (%p467) target = $region52
        $region51: #{tpu_custom_call.1} parent=47 // pred_region
          %s470 = sand.u32 %s138, 1
          %s471 = scalar_lea.sflag [#allocation3], %s470
          %s472 = sand.u32 %s138, 1
          %s473 = smul.addr %s472, 8
          %s474 = scalar_lea.vmem [#allocation2], %s473
          %475 = dma.done %s471, 128
        $region52: #{tpu_custom_call.1} parent=47 // pred_fallthru
          _
      $region48: #{tpu_custom_call.1} parent=5 // pred_fallthru
        _
    $region6: #{tpu_custom_call.1} parent=1 // loop_footer
      %s18 = sadd.s32 1, %s14
    $region7: #{tpu_custom_call.1} parent=1 // loop_footer_branch
      %13 = sbr.rel target = $region3
    $region8: #{tpu_custom_call.1} parent=1 // loop_exit
      _
    %476 = vsyncpa [#allocation3], 1
    %s477 = scalar_lea.sflag [#allocation3], 1
    %478 = vsyncpa %s477, 1

</llo_original>
